<compile_context>
chip_gen: v7x
topology: tpu7x:2x2x1
jax: 0.10.0
libtpu: 0.0.40
codegen_flags: <defaults>
</compile_context>

<pallas_src>
import math
from functools import partial

import jax
import jax.numpy as jnp
from jax.experimental import pallas as pl
from jax.experimental.pallas import tpu as pltpu


def _round_up(x: int, m: int) -> int:
    return ((x + m - 1) // m) * m


def _cdiv(a: int, b: int) -> int:
    return (a + b - 1) // b


def _sublane_align(dtype) -> int:
    # Min second-to-last-dim granularity: f32 -> 8, bf16 -> 16, int8/fp8 -> 32.
    return max(8, 32 // jnp.dtype(dtype).itemsize)


def _choose_tile(dim: int, max_tile: int, align: int) -> int:
    """Largest aligned tile <= max_tile, balanced so padding waste stays small."""
    if dim <= max_tile:
        return _round_up(dim, align)
    n_tiles = _cdiv(dim, max_tile)
    return _round_up(_cdiv(dim, n_tiles), align)


def _pad2(x, rows: int, cols: int):
    r, c = x.shape
    if r == rows and c == cols:
        return x  # skip the HBM copy when already tile-aligned
    return jnp.pad(x, ((0, rows - r), (0, cols - c)))


def _vmem_limit(nbytes: int) -> int:
    # Estimate * margin, clamped: >= default scoped limit, <= 48 MiB so v7x
    # keeps headroom for compiler-internal scratch.
    return min(max(int(nbytes * 1.5) + (4 << 20), 32 << 20), 48 << 20)


# ----------------------------------------------------------------------------
# Kernels
# ----------------------------------------------------------------------------
def _mm_single_k_kernel(a_ref, b_ref, o_ref):
    """One (tm, tn) output tile; the whole K dim fits a single block."""
    o_ref[...] = jnp.dot(
        a_ref[...], b_ref[...], preferred_element_type=jnp.float32
    ).astype(o_ref.dtype)


def _mm_acc_kernel(a_ref, b_ref, o_ref, acc_ref):
    """Generic tiled matmul; K is the last (reduction) grid axis."""
    k = pl.program_id(2)

    @pl.when(k == 0)
    def _():
        acc_ref[...] = jnp.zeros_like(acc_ref)

    acc_ref[...] += jnp.dot(
        a_ref[...], b_ref[...], preferred_element_type=jnp.float32
    )

    @pl.when(k == pl.num_programs(2) - 1)
    def _():
        o_ref[...] = acc_ref[...].astype(o_ref.dtype)


def _mm_resident_rhs_kernel(a_ref, b_ref, o_ref, acc_ref, *, tk):
    """Matmul with the FULL rhs resident in VMEM.

    grid = (M tiles, K tiles).  b_ref has a constant index_map so it is DMA'd
    from HBM exactly once and revisited by every grid step; the k-th (tk, Np)
    slab is sliced out of VMEM with a dynamic, tk-aligned offset.
    """
    k = pl.program_id(1)

    @pl.when(k == 0)
    def _():
        acc_ref[...] = jnp.zeros_like(acc_ref)

    k0 = pl.multiple_of(k * tk, tk)
    acc_ref[...] += jnp.dot(
        a_ref[...], b_ref[pl.ds(k0, tk), :], preferred_element_type=jnp.float32
    )

    @pl.when(k == pl.num_programs(1) - 1)
    def _():
        o_ref[...] = acc_ref[...].astype(o_ref.dtype)


# ----------------------------------------------------------------------------
# Tiled matmul wrapper
# ----------------------------------------------------------------------------
def _tiled_matmul(a, b, *, out_dtype, tm_max=512, tn_max=256, tk_max=512,
                  resident_rhs_max_bytes=8 * 1024 * 1024):
    """C = A @ B with zero-padding to tile multiples (sliced off afterwards)."""
    M, K = a.shape
    K2, N = b.shape
    assert K == K2, (a.shape, b.shape)

    a_item = jnp.dtype(a.dtype).itemsize
    b_item = jnp.dtype(b.dtype).itemsize
    o_item = jnp.dtype(out_dtype).itemsize

    tm = _choose_tile(M, tm_max, _sublane_align(a.dtype))
    tn = _choose_tile(N, tn_max, 128)
    Mp = _round_up(M, tm)
    Np = _round_up(N, tn)

    # ---------- single-K path: K fits one (un-padded) full-extent block ------
    if K <= tk_max:
        a_p = _pad2(a, Mp, K)          # K stays un-padded: no zero columns
        b_p = _pad2(b, K, Np)
        vmem = _vmem_limit(2 * tm * K * a_item + 2 * K * tn * b_item
                           + 2 * tm * tn * o_item)
        out = pl.pallas_call(
            _mm_single_k_kernel,
            out_shape=jax.ShapeDtypeStruct((Mp, Np), out_dtype),
            grid_spec=pltpu.PrefetchScalarGridSpec(
                num_scalar_prefetch=0,
                grid=(Mp // tm, Np // tn),
                in_specs=[
                    pl.BlockSpec((tm, K), lambda i, j: (i, 0)),
                    pl.BlockSpec((K, tn), lambda i, j: (0, j)),
                ],
                out_specs=pl.BlockSpec((tm, tn), lambda i, j: (i, j)),
            ),
            compiler_params=pltpu.CompilerParams(
                dimension_semantics=("parallel", "parallel"),
                vmem_limit_bytes=vmem,
            ),
            cost_estimate=pl.CostEstimate(
                flops=2 * Mp * Np * K, transcendentals=0,
                bytes_accessed=Mp * K * a_item + K * Np * b_item
                + Mp * Np * o_item,
            ),
        )(a_p, b_p)
        return out[:M, :N]

    # ---------- multi-K path --------------------------------------------------
    tk = _choose_tile(K, tk_max, 128)
    Kp = _round_up(K, tk)

    a_p = _pad2(a, Mp, Kp)
    b_p = _pad2(b, Kp, Np)
    cost = pl.CostEstimate(
        flops=2 * Mp * Np * Kp, transcendentals=0,
        bytes_accessed=Mp * Kp * a_item + Kp * Np * b_item + Mp * Np * o_item,
    )

    resident = (Kp * Np * b_item <= resident_rhs_max_bytes) and (Np <= 512)
    if resident:
        # rhs (support) stays resident in VMEM across all (i, k) steps -> it is
        # streamed from HBM once instead of once per M-row-tile.
        vmem = _vmem_limit(2 * tm * tk * a_item + 2 * Kp * Np * b_item
                           + 2 * tm * Np * o_item + tm * Np * 4)
        out = pl.pallas_call(
            partial(_mm_resident_rhs_kernel, tk=tk),
            out_shape=jax.ShapeDtypeStruct((Mp, Np), out_dtype),
            grid_spec=pltpu.PrefetchScalarGridSpec(
                num_scalar_prefetch=0,
                grid=(Mp // tm, Kp // tk),
                in_specs=[
                    pl.BlockSpec((tm, tk), lambda i, k: (i, k)),
                    pl.BlockSpec((Kp, Np), lambda i, k: (0, 0)),  # DMA'd once
                ],
                out_specs=pl.BlockSpec((tm, Np), lambda i, k: (i, 0)),
                scratch_shapes=[pltpu.VMEM((tm, Np), jnp.float32)],
            ),
            compiler_params=pltpu.CompilerParams(
                # TODO(synk): on v7x, pltpu.CORE_PARALLEL on the leading M axis
                # (or an explicit core_map split) would engage both TensorCores;
                # kept generation-portable "parallel" here.
                dimension_semantics=("parallel", "arbitrary"),
                vmem_limit_bytes=vmem,
            ),
            cost_estimate=cost,
        )(a_p, b_p)
        return out[:M, :N]

    vmem = _vmem_limit(2 * tm * tk * a_item + 2 * tk * tn * b_item
                       + 2 * tm * tn * o_item + tm * tn * 4)
    out = pl.pallas_call(
        _mm_acc_kernel,
        out_shape=jax.ShapeDtypeStruct((Mp, Np), out_dtype),
        grid_spec=pltpu.PrefetchScalarGridSpec(
            num_scalar_prefetch=0,
            grid=(Mp // tm, Np // tn, Kp // tk),
            in_specs=[
                pl.BlockSpec((tm, tk), lambda i, j, k: (i, k)),
                pl.BlockSpec((tk, tn), lambda i, j, k: (k, j)),
            ],
            out_specs=pl.BlockSpec((tm, tn), lambda i, j, k: (i, j)),
            scratch_shapes=[pltpu.VMEM((tm, tn), jnp.float32)],
        ),
        compiler_params=pltpu.CompilerParams(
            dimension_semantics=("parallel", "parallel", "arbitrary"),
            vmem_limit_bytes=vmem,
        ),
        cost_estimate=cost,
    )(a_p, b_p)
    return out[:M, :N]


# ----------------------------------------------------------------------------
# GCN layer forward
# ----------------------------------------------------------------------------
@partial(jax.jit, static_argnames=("compute_dtype",))
def graph_convolution(x, adj, weight, *, compute_dtype=jnp.bfloat16):
    """GCN layer: out = adj @ (x @ weight).

    `compute_dtype` (default bfloat16) is the dtype of the MXU operands and of
    the intermediate `support`; accumulation is always f32 and the output keeps
    x.dtype.  Pass compute_dtype=None for a pure-f32 computation.
    """
    n_nodes, c_in = x.shape
    assert adj.shape == (n_nodes, n_nodes), adj.shape
    assert weight.shape[0] == c_in, (weight.shape, c_in)
    out_dtype = x.dtype

    if compute_dtype is not None:
        # Cast BEFORE padding so any padded copies are made at the narrow width.
        # TODO(synk): on v5e/v6e an int8-quantized adj (per-row scale) would
        # halve HBM bytes again; v7x's MXU has no int path, so not done here.
        x = x.astype(compute_dtype)
        weight = weight.astype(compute_dtype)
        adj = adj.astype(compute_dtype)
    support_dtype = compute_dtype if compute_dtype is not None else out_dtype

    # support = x @ weight: tiny, single-K (C_in is NOT padded to 128), written
    # directly in compute_dtype so the dominant matmul streams narrow bytes.
    support = _tiled_matmul(x, weight, out_dtype=support_dtype,
                            tm_max=1024, tn_max=256, tk_max=2048)

    # out = adj @ support: HBM-bound on the adj stream.  Large row tiles
    # amortize per-step overhead; support goes VMEM-resident when it fits.
    # TODO(synk): torch.spmm's sparse-CSR fast path has no dense-Pallas
    # equivalent; adjacency is treated as a dense matrix (same result).
    out = _tiled_matmul(adj, support, out_dtype=out_dtype,
                        tm_max=1024, tn_max=256, tk_max=512,
                        resident_rhs_max_bytes=8 * 1024 * 1024)
    return out


if __name__ == "__main__":
    key = jax.random.PRNGKey(0)
    kx, kadj, kw = jax.random.split(key, 3)

    # --- Small graph (exercises the single-K path of both matmuls) -----------
    N, C_IN, C_OUT = 128, 32, 64
    x = jax.random.normal(kx, (N, C_IN), dtype=jnp.float32)
    adj_raw = (jax.random.uniform(kadj, (N, N)) < 0.1).astype(jnp.float32)
    adj = adj_raw / jnp.maximum(adj_raw.sum(axis=1, keepdims=True), 1.0)

    # Parameter init matching reset_parameters(): uniform(-stdv, stdv).
    stdv = 1.0 / math.sqrt(C_OUT)
    weight = jax.random.uniform(
        kw, (C_IN, C_OUT), minval=-stdv, maxval=stdv, dtype=jnp.float32
    )

    # Pure-f32 path: tight check against the f32 reference.
    out_f32 = jax.block_until_ready(
        graph_convolution(x, adj, weight, compute_dtype=None))
    ref_f32 = adj @ (x @ weight)
    assert out_f32.shape == (N, C_OUT)
    assert jnp.allclose(out_f32, ref_f32, atol=1e-4, rtol=1e-4), "f32 mismatch"

    # Default (bf16-operand) path: check against a matching bf16 reference.
    out_bf = jax.block_until_ready(graph_convolution(x, adj, weight))
    support_bf = jnp.dot(x.astype(jnp.bfloat16), weight.astype(jnp.bfloat16),
                         preferred_element_type=jnp.float32).astype(jnp.bfloat16)
    ref_bf = jnp.dot(adj.astype(jnp.bfloat16), support_bf,
                     preferred_element_type=jnp.float32)
    assert out_bf.dtype == jnp.float32
    assert jnp.allclose(out_bf, ref_bf, atol=1e-3, rtol=1e-2), "bf16 mismatch"

    # --- Larger graph: exercises the multi-K, VMEM-resident-support path -----
    N2 = 1536
    kx2, kadj2 = jax.random.split(jax.random.PRNGKey(1), 2)
    x2 = jax.random.normal(kx2, (N2, C_IN), dtype=jnp.float32)
    adj2_raw = (jax.random.uniform(kadj2, (N2, N2)) < 0.05).astype(jnp.float32)
    adj2 = adj2_raw / jnp.maximum(adj2_raw.sum(axis=1, keepdims=True), 1.0)
    out2 = jax.block_until_ready(graph_convolution(x2, adj2, weight))
    support2 = jnp.dot(x2.astype(jnp.bfloat16), weight.astype(jnp.bfloat16),
                       preferred_element_type=jnp.float32).astype(jnp.bfloat16)
    ref2 = jnp.dot(adj2.astype(jnp.bfloat16), support2,
                   preferred_element_type=jnp.float32)
    assert out2.shape == (N2, C_OUT)
    assert jnp.allclose(out2, ref2, atol=1e-3, rtol=1e-2), "large-graph mismatch"

    # --- Generic 3-axis accumulator fallback (resident rhs disabled) ---------
    ka, kb = jax.random.split(jax.random.PRNGKey(2), 2)
    a3 = jax.random.normal(ka, (256, 384), dtype=jnp.float32)
    b3 = jax.random.normal(kb, (384, 200), dtype=jnp.float32)
    out3 = jax.block_until_ready(
        jax.jit(lambda a, b: _tiled_matmul(
            a, b, out_dtype=jnp.float32,
            tm_max=128, tn_max=128, tk_max=128,
            resident_rhs_max_bytes=0))(a3, b3))
    ref3 = jnp.dot(a3, b3, precision=jax.lax.Precision.HIGHEST)
    assert jnp.allclose(out3, ref3, atol=1e-2, rtol=1e-2), "fallback mismatch"

    print("KERNEL_OK")
</pallas_src>

<mosaic_0001>
module attributes {stable_mosaic.version = 11 : i64} {
  func.func @_mm_single_k_kernel(%arg0: i32, %arg1: i32, %arg2: memref<128x32xf32, #tpu.memory_space<vmem>>, %arg3: memref<32x128xf32, #tpu.memory_space<vmem>>, %arg4: memref<128x128xf32, #tpu.memory_space<vmem>>) attributes {dimension_semantics = [#tpu.dimension_semantics<parallel>, #tpu.dimension_semantics<parallel>], iteration_bounds = array<i64: 1, 1>, scalar_prefetch = 0 : i64, scratch_operands = 0 : i64, tpu.core_type = #tpu.core_type<tc>, window_params = [{transform_indices = @transform_0, window_bounds = array<i64: 128, 32>}, {transform_indices = @transform_1, window_bounds = array<i64: 32, 128>}, {transform_indices = @transform_2, window_bounds = array<i64: 128, 128>}]} {
    %c0 = arith.constant 0 : index
    %c0_0 = arith.constant 0 : index
    %0 = vector.load %arg2[%c0, %c0_0] : memref<128x32xf32, #tpu.memory_space<vmem>>, vector<128x32xf32>
    %c0_1 = arith.constant 0 : index
    %c0_2 = arith.constant 0 : index
    %1 = vector.load %arg3[%c0_1, %c0_2] : memref<32x128xf32, #tpu.memory_space<vmem>>, vector<32x128xf32>
    %cst = arith.constant dense<0.000000e+00> : vector<128x128xf32>
    %2 = tpu.matmul %0, %1, %cst {dimension_numbers = #tpu.dot_dimension_numbers<[1], [0], [0], [1], [0, 0, 1, 1], [], []>} : vector<128x32xf32>, vector<32x128xf32>, vector<128x128xf32> -> vector<128x128xf32>
    %c0_3 = arith.constant 0 : index
    %c0_4 = arith.constant 0 : index
    %3 = vector.load %arg4[%c0_3, %c0_4] : memref<128x128xf32, #tpu.memory_space<vmem>>, vector<128x128xf32>
    tpu.vector_store %arg4[%c0_3, %c0_4], %2 {strides = array<i32>} : memref<128x128xf32, #tpu.memory_space<vmem>>, vector<128x128xf32>,
    return
  }
  func.func @transform_0(%arg0: i32, %arg1: i32) -> (i32, i32) {
    %c0_i32 = arith.constant 0 : i32
    %c0_i32_0 = arith.constant 0 : i32
    return %arg0, %c0_i32 : i32, i32
  }
  func.func @transform_1(%arg0: i32, %arg1: i32) -> (i32, i32) {
    %c0_i32 = arith.constant 0 : i32
    %c0_i32_0 = arith.constant 0 : i32
    return %c0_i32, %arg1 : i32, i32
  }
  func.func @transform_2(%arg0: i32, %arg1: i32) -> (i32, i32) {
    %c0_i32 = arith.constant 0 : i32
    return %arg0, %arg1 : i32, i32
  }
}

module attributes {stable_mosaic.version = 11 : i64} {
  func.func @_mm_single_k_kernel(%arg0: i32, %arg1: i32, %arg2: memref<128x128xf32, #tpu.memory_space<vmem>>, %arg3: memref<128x128xf32, #tpu.memory_space<vmem>>, %arg4: memref<128x128xf32, #tpu.memory_space<vmem>>) attributes {dimension_semantics = [#tpu.dimension_semantics<parallel>, #tpu.dimension_semantics<parallel>], iteration_bounds = array<i64: 1, 1>, scalar_prefetch = 0 : i64, scratch_operands = 0 : i64, tpu.core_type = #tpu.core_type<tc>, window_params = [{transform_indices = @transform_0, window_bounds = array<i64: 128, 128>}, {transform_indices = @transform_1, window_bounds = array<i64: 128, 128>}, {transform_indices = @transform_2, window_bounds = array<i64: 128, 128>}]} {
    %c0 = arith.constant 0 : index
    %c0_0 = arith.constant 0 : index
    %0 = vector.load %arg2[%c0, %c0_0] : memref<128x128xf32, #tpu.memory_space<vmem>>, vector<128x128xf32>
    %c0_1 = arith.constant 0 : index
    %c0_2 = arith.constant 0 : index
    %1 = vector.load %arg3[%c0_1, %c0_2] : memref<128x128xf32, #tpu.memory_space<vmem>>, vector<128x128xf32>
    %cst = arith.constant dense<0.000000e+00> : vector<128x128xf32>
    %2 = tpu.matmul %0, %1, %cst {dimension_numbers = #tpu.dot_dimension_numbers<[1], [0], [0], [1], [0, 0, 1, 1], [], []>} : vector<128x128xf32>, vector<128x128xf32>, vector<128x128xf32> -> vector<128x128xf32>
    %c0_3 = arith.constant 0 : index
    %c0_4 = arith.constant 0 : index
    %3 = vector.load %arg4[%c0_3, %c0_4] : memref<128x128xf32, #tpu.memory_space<vmem>>, vector<128x128xf32>
    tpu.vector_store %arg4[%c0_3, %c0_4], %2 {strides = array<i32>} : memref<128x128xf32, #tpu.memory_space<vmem>>, vector<128x128xf32>,
    return
  }
  func.func @transform_0(%arg0: i32, %arg1: i32) -> (i32, i32) {
    %c0_i32 = arith.constant 0 : i32
    %c0_i32_0 = arith.constant 0 : i32
    return %arg0, %c0_i32 : i32, i32
  }
  func.func @transform_1(%arg0: i32, %arg1: i32) -> (i32, i32) {
    %c0_i32 = arith.constant 0 : i32
    %c0_i32_0 = arith.constant 0 : i32
    return %c0_i32, %arg1 : i32, i32
  }
  func.func @transform_2(%arg0: i32, %arg1: i32) -> (i32, i32) {
    %c0_i32 = arith.constant 0 : i32
    return %arg0, %arg1 : i32, i32
  }
}

</mosaic_0001>

<llo_original>
// kernel: graph_convolution.2
$region0: #{graph_convolution.2}
  #allocation0 [shape = 'u32[]', space=smem, size = 0x4, offset = 0x4, fixed_abs, tag = 'smem constant byte address 0x4 - core index']
  #allocation1 [shape = 'u32[144,128]{1,0:T(1,128)}', space=vmem, size = 0x12000, scoped, tag = 'internal scratch']
  %s0 = inlined_call_operand.vmem [shape: f32[128,32], index: 0, kind: input, shape index: {}]
  %s1 = inlined_call_operand.vmem [shape: f32[32,128], index: 1, kind: input, shape index: {}]
  %s2 = inlined_call_operand.vmem [shape: f32[128,128], index: 2, kind: output, shape index: {}]
  %s3 = sld [smem:[#allocation0]]
  $region18: #{graph_convolution.2} parent=0
    _
  %s5 = ssub.s32 1, %s3
  %s6 = scalar_select 0, %s5, %s3
  // Predicated region
  $region2: #{graph_convolution.2} parent=0 // pred_check
    _
  $region3: #{graph_convolution.2} parent=0 // pred_check_branch
    %8 = sbr.rel (0) target = $region5
  $region4: #{graph_convolution.2} parent=0 // pred_region
    _
  $region5: #{graph_convolution.2} parent=0 // pred_fallthru
    _
  // Predicated region
  $region6: #{graph_convolution.2} parent=0 // pred_check
    _
  $region7: #{graph_convolution.2} parent=0 // pred_check_branch
    %10 = sbr.rel (0) target = $region9
  $region8: #{graph_convolution.2} parent=0 // pred_region
    _
  $region9: #{graph_convolution.2} parent=0 // pred_fallthru
    _
  %v11 = vld [vmem:[%s0] sm:$0xff]
  %v12 = vld [vmem:[%s0 + $0x8] sm:$0xff]
  %v13 = vld [vmem:[%s0 + $0x10] sm:$0xff]
  %v14 = vld [vmem:[%s0 + $0x18] sm:$0xff]
  %v15 = vld [vmem:[%s0 + $0x20] sm:$0xff]
  %v16 = vld [vmem:[%s0 + $0x28] sm:$0xff]
  %v17 = vld [vmem:[%s0 + $0x30] sm:$0xff]
  %v18 = vld [vmem:[%s0 + $0x38] sm:$0xff]
  %v19 = vld [vmem:[%s0 + $0x40] sm:$0xff]
  %v20 = vld [vmem:[%s0 + $0x48] sm:$0xff]
  %v21 = vld [vmem:[%s0 + $0x50] sm:$0xff]
  %v22 = vld [vmem:[%s0 + $0x58] sm:$0xff]
  %v23 = vld [vmem:[%s0 + $0x60] sm:$0xff]
  %v24 = vld [vmem:[%s0 + $0x68] sm:$0xff]
  %v25 = vld [vmem:[%s0 + $0x70] sm:$0xff]
  %v26 = vld [vmem:[%s0 + $0x78] sm:$0xff]
  %v27 = vld [vmem:[%s1] sm:$0xff]
  %v28 = vld [vmem:[%s1 + $0x8] sm:$0xff]
  %v29 = vld [vmem:[%s1 + $0x10] sm:$0xff]
  %v30 = vld [vmem:[%s1 + $0x18] sm:$0xff]
  %vm31 = vcmask 261120
  %v33 = vsel %vm31, %v11, 0
  %v36 = vsel %vm31, %v12, 0
  %v39 = vsel %vm31, %v13, 0
  %v42 = vsel %vm31, %v14, 0
  %v45 = vsel %vm31, %v15, 0
  %v48 = vsel %vm31, %v16, 0
  %v51 = vsel %vm31, %v17, 0
  %v54 = vsel %vm31, %v18, 0
  %v57 = vsel %vm31, %v19, 0
  %v60 = vsel %vm31, %v20, 0
  %v63 = vsel %vm31, %v21, 0
  %v66 = vsel %vm31, %v22, 0
  %v69 = vsel %vm31, %v23, 0
  %v72 = vsel %vm31, %v24, 0
  %v75 = vsel %vm31, %v25, 0
  %v78 = vsel %vm31, %v26, 0
  %80 = vmatprep.subr.mxu0 0.0
  %81 = vmatpush1.msra.mxu0 %v27
  %82 = vmatprep.subr.mxu0 0.0
  %83 = vmatpush1.msra.mxu0 %v28
  %84 = vmatprep.subr.mxu0 0.0
  %85 = vmatpush1.msra.mxu0 %v29
  %86 = vmatprep.subr.mxu0 0.0
  %87 = vmatpush1.msra.mxu0 %v30
  %88 = vmatprep.subr.mxu0 0.0
  %89 = vmatpush1.msra.mxu0 0.0
  %90 = vmatprep.subr.mxu0 0.0
  %91 = vmatpush1.msra.mxu0 0.0
  %92 = vmatprep.subr.mxu0 0.0
  %93 = vmatpush1.msra.mxu0 0.0
  %94 = vmatprep.subr.mxu0 0.0
  %95 = vmatpush1.msra.mxu0 0.0
  %96 = vmatprep.subr.mxu0 0.0
  %97 = vmatpush1.msra.mxu0 0.0
  %98 = vmatprep.subr.mxu0 0.0
  %99 = vmatpush1.msra.mxu0 0.0
  %100 = vmatprep.subr.mxu0 0.0
  %101 = vmatpush1.msra.mxu0 0.0
  %102 = vmatprep.subr.mxu0 0.0
  %103 = vmatpush1.msra.mxu0 0.0
  %104 = vmatprep.subr.mxu0 0.0
  %105 = vmatpush1.msra.mxu0 0.0
  %106 = vmatprep.subr.mxu0 0.0
  %107 = vmatpush1.msra.mxu0 0.0
  %108 = vmatprep.subr.mxu0 0.0
  %109 = vmatpush1.msra.mxu0 0.0
  %110 = vmatprep.subr.mxu0 0.0
  %111 = vmatpush1.msra.mxu0 0.0
  %112 = vmatprep.subr.mxu0 0.0
  %113 = vmatpush1.msra.mxu0 0.0
  %114 = vmatprep.subr.mxu0 0.0
  %115 = vmatpush1.msra.mxu0 0.0
  %116 = vmatprep.subr.mxu0 0.0
  %117 = vmatpush1.msra.mxu0 0.0
  %118 = vmatprep.subr.mxu0 0.0
  %119 = vmatpush1.msra.mxu0 0.0
  %120 = vmatprep.subr.mxu0 0.0
  %121 = vmatpush1.msra.mxu0 0.0
  %122 = vmatprep.subr.mxu0 0.0
  %123 = vmatpush1.msra.mxu0 0.0
  %124 = vmatprep.subr.mxu0 0.0
  %125 = vmatpush1.msra.mxu0 0.0
  %126 = vmatprep.subr.mxu0 0.0
  %127 = vmatpush1.msra.mxu0 0.0
  %128 = vmatprep.subr.mxu0 0.0
  %129 = vmatpush1.msra.mxu0 0.0
  %130 = vmatprep.subr.mxu0 0.0
  %131 = vmatpush1.msra.mxu0 0.0
  %132 = vmatprep.subr.mxu0 0.0
  %133 = vmatpush1.msra.mxu0 0.0
  %134 = vmatprep.subr.mxu0 0.0
  %135 = vmatpush1.msra.mxu0 0.0
  %136 = vmatprep.subr.mxu0 0.0
  %137 = vmatpush1.msra.mxu0 0.0
  %138 = vmatprep.subr.mxu0 0.0
  %139 = vmatpush1.msra.mxu0 0.0
  %140 = vmatprep.subr.mxu0 0.0
  %141 = vmatpush1.msra.mxu0 0.0
  %142 = vmatprep.subr.mxu0 0.0
  %143 = vmatpush1.msra.mxu0 0.0
  %144 = vmatprep.mubr.f32.mxu0 0.0
  %145 = vmatmul.mubr.f32.gmra.mrb[0].mxu0 %v33
  %v146 = vpop.f32.mrb[0].mxu0
  %v147 = vadd.f32 0.0, %v146
  %v148 = vpop.f32.mrb[0].mxu0
  %149 = vmatprep.mubr.f32.mxu0 0.0
  %150 = vmatmul.mubr.f32.gmra.mrb[0].mxu0 %v36
  %v151 = vpop.f32.mrb[0].mxu0
  %v152 = vadd.f32 0.0, %v151
  %v153 = vpop.f32.mrb[0].mxu0
  %154 = vmatprep.mubr.f32.mxu0 0.0
  %155 = vmatmul.mubr.f32.gmra.mrb[0].mxu0 %v39
  %v156 = vpop.f32.mrb[0].mxu0
  %v157 = vadd.f32 0.0, %v156
  %v158 = vpop.f32.mrb[0].mxu0
  %159 = vmatprep.mubr.f32.mxu0 0.0
  %160 = vmatmul.mubr.f32.gmra.mrb[0].mxu0 %v42
  %v161 = vpop.f32.mrb[0].mxu0
  %v162 = vadd.f32 0.0, %v161
  %v163 = vpop.f32.mrb[0].mxu0
  %164 = vmatprep.mubr.f32.mxu0 0.0
  %165 = vmatmul.mubr.f32.gmra.mrb[0].mxu0 %v45
  %v166 = vpop.f32.mrb[0].mxu0
  %v167 = vadd.f32 0.0, %v166
  %v168 = vpop.f32.mrb[0].mxu0
  %169 = vmatprep.mubr.f32.mxu0 0.0
  %170 = vmatmul.mubr.f32.gmra.mrb[0].mxu0 %v48
  %v171 = vpop.f32.mrb[0].mxu0
  %v172 = vadd.f32 0.0, %v171
  %v173 = vpop.f32.mrb[0].mxu0
  %174 = vmatprep.mubr.f32.mxu0 0.0
  %175 = vmatmul.mubr.f32.gmra.mrb[0].mxu0 %v51
  %v176 = vpop.f32.mrb[0].mxu0
  %v177 = vadd.f32 0.0, %v176
  %v178 = vpop.f32.mrb[0].mxu0
  %179 = vmatprep.mubr.f32.mxu0 0.0
  %180 = vmatmul.mubr.f32.gmra.mrb[0].mxu0 %v54
  %v181 = vpop.f32.mrb[0].mxu0
  %v182 = vadd.f32 0.0, %v181
  %v183 = vpop.f32.mrb[0].mxu0
  %184 = vmatprep.mubr.f32.mxu0 0.0
  %185 = vmatmul.mubr.f32.gmra.mrb[0].mxu0 %v57
  %v186 = vpop.f32.mrb[0].mxu0
  %v187 = vadd.f32 0.0, %v186
  %v188 = vpop.f32.mrb[0].mxu0
  %189 = vmatprep.mubr.f32.mxu0 0.0
  %190 = vmatmul.mubr.f32.gmra.mrb[0].mxu0 %v60
  %v191 = vpop.f32.mrb[0].mxu0
  %v192 = vadd.f32 0.0, %v191
  %v193 = vpop.f32.mrb[0].mxu0
  %194 = vmatprep.mubr.f32.mxu0 0.0
  %195 = vmatmul.mubr.f32.gmra.mrb[0].mxu0 %v63
  %v196 = vpop.f32.mrb[0].mxu0
  %v197 = vadd.f32 0.0, %v196
  %v198 = vpop.f32.mrb[0].mxu0
  %199 = vmatprep.mubr.f32.mxu0 0.0
  %200 = vmatmul.mubr.f32.gmra.mrb[0].mxu0 %v66
  %v201 = vpop.f32.mrb[0].mxu0
  %v202 = vadd.f32 0.0, %v201
  %v203 = vpop.f32.mrb[0].mxu0
  %204 = vmatprep.mubr.f32.mxu0 0.0
  %205 = vmatmul.mubr.f32.gmra.mrb[0].mxu0 %v69
  %v206 = vpop.f32.mrb[0].mxu0
  %v207 = vadd.f32 0.0, %v206
  %v208 = vpop.f32.mrb[0].mxu0
  %209 = vmatprep.mubr.f32.mxu0 0.0
  %210 = vmatmul.mubr.f32.gmra.mrb[0].mxu0 %v72
  %v211 = vpop.f32.mrb[0].mxu0
  %v212 = vadd.f32 0.0, %v211
  %v213 = vpop.f32.mrb[0].mxu0
  %214 = vmatprep.mubr.f32.mxu0 0.0
  %215 = vmatmul.mubr.f32.gmra.mrb[0].mxu0 %v75
  %v216 = vpop.f32.mrb[0].mxu0
  %v217 = vadd.f32 0.0, %v216
  %v218 = vpop.f32.mrb[0].mxu0
  %219 = vmatprep.mubr.f32.mxu0 0.0
  %220 = vmatmul.mubr.f32.gmra.mrb[0].mxu0 %v78
  %v221 = vpop.f32.mrb[0].mxu0
  %v222 = vadd.f32 0.0, %v221
  %v223 = vpop.f32.mrb[0].mxu0
  %224 = vdwg.mxu0
  %225 = vst [vmem:[%s2] sm:$0xff] %v147
  %226 = vst [vmem:[%s2 + $0x8] sm:$0xff] %v152
  %227 = vst [vmem:[%s2 + $0x10] sm:$0xff] %v157
  %228 = vst [vmem:[%s2 + $0x18] sm:$0xff] %v162
  %229 = vst [vmem:[%s2 + $0x20] sm:$0xff] %v167
  %230 = vst [vmem:[%s2 + $0x28] sm:$0xff] %v172
  %231 = vst [vmem:[%s2 + $0x30] sm:$0xff] %v177
  %232 = vst [vmem:[%s2 + $0x38] sm:$0xff] %v182
  %233 = vst [vmem:[%s2 + $0x40] sm:$0xff] %v187
  %234 = vst [vmem:[%s2 + $0x48] sm:$0xff] %v192
  %235 = vst [vmem:[%s2 + $0x50] sm:$0xff] %v197
  %236 = vst [vmem:[%s2 + $0x58] sm:$0xff] %v202
  %237 = vst [vmem:[%s2 + $0x60] sm:$0xff] %v207
  %238 = vst [vmem:[%s2 + $0x68] sm:$0xff] %v212
  %239 = vst [vmem:[%s2 + $0x70] sm:$0xff] %v217
  %240 = vst [vmem:[%s2 + $0x78] sm:$0xff] %v222
  // Predicated region
  $region10: #{graph_convolution.2} parent=0 // pred_check
    _
  $region11: #{graph_convolution.2} parent=0 // pred_check_branch
    %242 = sbr.rel (0) target = $region13
  $region12: #{graph_convolution.2} parent=0 // pred_region
    _
  $region13: #{graph_convolution.2} parent=0 // pred_fallthru
    _
  // Predicated region
  $region14: #{graph_convolution.2} parent=0 // pred_check
    _
  $region15: #{graph_convolution.2} parent=0 // pred_check_branch
    %244 = sbr.rel (0) target = $region17
  $region16: #{graph_convolution.2} parent=0 // pred_region
    _
  $region17: #{graph_convolution.2} parent=0 // pred_fallthru
    _

// kernel: graph_convolution.3
$region0: #{graph_convolution.3}
  #allocation0 [shape = 'u32[]', space=smem, size = 0x4, offset = 0x4, fixed_abs, tag = 'smem constant byte address 0x4 - core index']
  #allocation1 [shape = 'u32[144,128]{1,0:T(1,128)}', space=vmem, size = 0x12000, scoped, tag = 'internal scratch']
  %s0 = inlined_call_operand.vmem [shape: f32[128,128], index: 0, kind: input, shape index: {}]
  %s1 = inlined_call_operand.vmem [shape: f32[128,128], index: 1, kind: input, shape index: {}]
  %s2 = inlined_call_operand.vmem [shape: f32[128,128], index: 2, kind: output, shape index: {}]
  %s3 = sld [smem:[#allocation0]]
  $region18: #{graph_convolution.3} parent=0
    _
  %s5 = ssub.s32 1, %s3
  %s6 = scalar_select 0, %s5, %s3
  // Predicated region
  $region2: #{graph_convolution.3} parent=0 // pred_check
    _
  $region3: #{graph_convolution.3} parent=0 // pred_check_branch
    %8 = sbr.rel (0) target = $region5
  $region4: #{graph_convolution.3} parent=0 // pred_region
    _
  $region5: #{graph_convolution.3} parent=0 // pred_fallthru
    _
  // Predicated region
  $region6: #{graph_convolution.3} parent=0 // pred_check
    _
  $region7: #{graph_convolution.3} parent=0 // pred_check_branch
    %10 = sbr.rel (0) target = $region9
  $region8: #{graph_convolution.3} parent=0 // pred_region
    _
  $region9: #{graph_convolution.3} parent=0 // pred_fallthru
    _
  %v11 = vld [vmem:[%s0] sm:$0xff]
  %v12 = vld [vmem:[%s0 + $0x8] sm:$0xff]
  %v13 = vld [vmem:[%s0 + $0x10] sm:$0xff]
  %v14 = vld [vmem:[%s0 + $0x18] sm:$0xff]
  %v15 = vld [vmem:[%s0 + $0x20] sm:$0xff]
  %v16 = vld [vmem:[%s0 + $0x28] sm:$0xff]
  %v17 = vld [vmem:[%s0 + $0x30] sm:$0xff]
  %v18 = vld [vmem:[%s0 + $0x38] sm:$0xff]
  %v19 = vld [vmem:[%s0 + $0x40] sm:$0xff]
  %v20 = vld [vmem:[%s0 + $0x48] sm:$0xff]
  %v21 = vld [vmem:[%s0 + $0x50] sm:$0xff]
  %v22 = vld [vmem:[%s0 + $0x58] sm:$0xff]
  %v23 = vld [vmem:[%s0 + $0x60] sm:$0xff]
  %v24 = vld [vmem:[%s0 + $0x68] sm:$0xff]
  %v25 = vld [vmem:[%s0 + $0x70] sm:$0xff]
  %v26 = vld [vmem:[%s0 + $0x78] sm:$0xff]
  %v27 = vld [vmem:[%s1] sm:$0xff]
  %v28 = vld [vmem:[%s1 + $0x8] sm:$0xff]
  %v29 = vld [vmem:[%s1 + $0x10] sm:$0xff]
  %v30 = vld [vmem:[%s1 + $0x18] sm:$0xff]
  %v31 = vld [vmem:[%s1 + $0x20] sm:$0xff]
  %v32 = vld [vmem:[%s1 + $0x28] sm:$0xff]
  %v33 = vld [vmem:[%s1 + $0x30] sm:$0xff]
  %v34 = vld [vmem:[%s1 + $0x38] sm:$0xff]
  %v35 = vld [vmem:[%s1 + $0x40] sm:$0xff]
  %v36 = vld [vmem:[%s1 + $0x48] sm:$0xff]
  %v37 = vld [vmem:[%s1 + $0x50] sm:$0xff]
  %v38 = vld [vmem:[%s1 + $0x58] sm:$0xff]
  %v39 = vld [vmem:[%s1 + $0x60] sm:$0xff]
  %v40 = vld [vmem:[%s1 + $0x68] sm:$0xff]
  %v41 = vld [vmem:[%s1 + $0x70] sm:$0xff]
  %v42 = vld [vmem:[%s1 + $0x78] sm:$0xff]
  %43 = vmatprep.subr.mxu0 0.0
  %44 = vmatpush1.msra.mxu0 %v27
  %45 = vmatprep.subr.mxu0 0.0
  %46 = vmatpush1.msra.mxu0 %v28
  %47 = vmatprep.subr.mxu0 0.0
  %48 = vmatpush1.msra.mxu0 %v29
  %49 = vmatprep.subr.mxu0 0.0
  %50 = vmatpush1.msra.mxu0 %v30
  %51 = vmatprep.subr.mxu0 0.0
  %52 = vmatpush1.msra.mxu0 %v31
  %53 = vmatprep.subr.mxu0 0.0
  %54 = vmatpush1.msra.mxu0 %v32
  %55 = vmatprep.subr.mxu0 0.0
  %56 = vmatpush1.msra.mxu0 %v33
  %57 = vmatprep.subr.mxu0 0.0
  %58 = vmatpush1.msra.mxu0 %v34
  %59 = vmatprep.subr.mxu0 0.0
  %60 = vmatpush1.msra.mxu0 %v35
  %61 = vmatprep.subr.mxu0 0.0
  %62 = vmatpush1.msra.mxu0 %v36
  %63 = vmatprep.subr.mxu0 0.0
  %64 = vmatpush1.msra.mxu0 %v37
  %65 = vmatprep.subr.mxu0 0.0
  %66 = vmatpush1.msra.mxu0 %v38
  %67 = vmatprep.subr.mxu0 0.0
  %68 = vmatpush1.msra.mxu0 %v39
  %69 = vmatprep.subr.mxu0 0.0
  %70 = vmatpush1.msra.mxu0 %v40
  %71 = vmatprep.subr.mxu0 0.0
  %72 = vmatpush1.msra.mxu0 %v41
  %73 = vmatprep.subr.mxu0 0.0
  %74 = vmatpush1.msra.mxu0 %v42
  %75 = vmatprep.subr.mxu0 0.0
  %76 = vmatpush1.msra.mxu0 0.0
  %77 = vmatprep.subr.mxu0 0.0
  %78 = vmatpush1.msra.mxu0 0.0
  %79 = vmatprep.subr.mxu0 0.0
  %80 = vmatpush1.msra.mxu0 0.0
  %81 = vmatprep.subr.mxu0 0.0
  %82 = vmatpush1.msra.mxu0 0.0
  %83 = vmatprep.subr.mxu0 0.0
  %84 = vmatpush1.msra.mxu0 0.0
  %85 = vmatprep.subr.mxu0 0.0
  %86 = vmatpush1.msra.mxu0 0.0
  %87 = vmatprep.subr.mxu0 0.0
  %88 = vmatpush1.msra.mxu0 0.0
  %89 = vmatprep.subr.mxu0 0.0
  %90 = vmatpush1.msra.mxu0 0.0
  %91 = vmatprep.subr.mxu0 0.0
  %92 = vmatpush1.msra.mxu0 0.0
  %93 = vmatprep.subr.mxu0 0.0
  %94 = vmatpush1.msra.mxu0 0.0
  %95 = vmatprep.subr.mxu0 0.0
  %96 = vmatpush1.msra.mxu0 0.0
  %97 = vmatprep.subr.mxu0 0.0
  %98 = vmatpush1.msra.mxu0 0.0
  %99 = vmatprep.subr.mxu0 0.0
  %100 = vmatpush1.msra.mxu0 0.0
  %101 = vmatprep.subr.mxu0 0.0
  %102 = vmatpush1.msra.mxu0 0.0
  %103 = vmatprep.subr.mxu0 0.0
  %104 = vmatpush1.msra.mxu0 0.0
  %105 = vmatprep.subr.mxu0 0.0
  %106 = vmatpush1.msra.mxu0 0.0
  %107 = vmatprep.mubr.f32.mxu0 0.0
  %108 = vmatmul.mubr.f32.gmra.mrb[0].mxu0 %v11
  %v109 = vpop.f32.mrb[0].mxu0
  %v110 = vadd.f32 0.0, %v109
  %v111 = vpop.f32.mrb[0].mxu0
  %112 = vmatprep.mubr.f32.mxu0 0.0
  %113 = vmatmul.mubr.f32.gmra.mrb[0].mxu0 %v12
  %v114 = vpop.f32.mrb[0].mxu0
  %v115 = vadd.f32 0.0, %v114
  %v116 = vpop.f32.mrb[0].mxu0
  %117 = vmatprep.mubr.f32.mxu0 0.0
  %118 = vmatmul.mubr.f32.gmra.mrb[0].mxu0 %v13
  %v119 = vpop.f32.mrb[0].mxu0
  %v120 = vadd.f32 0.0, %v119
  %v121 = vpop.f32.mrb[0].mxu0
  %122 = vmatprep.mubr.f32.mxu0 0.0
  %123 = vmatmul.mubr.f32.gmra.mrb[0].mxu0 %v14
  %v124 = vpop.f32.mrb[0].mxu0
  %v125 = vadd.f32 0.0, %v124
  %v126 = vpop.f32.mrb[0].mxu0
  %127 = vmatprep.mubr.f32.mxu0 0.0
  %128 = vmatmul.mubr.f32.gmra.mrb[0].mxu0 %v15
  %v129 = vpop.f32.mrb[0].mxu0
  %v130 = vadd.f32 0.0, %v129
  %v131 = vpop.f32.mrb[0].mxu0
  %132 = vmatprep.mubr.f32.mxu0 0.0
  %133 = vmatmul.mubr.f32.gmra.mrb[0].mxu0 %v16
  %v134 = vpop.f32.mrb[0].mxu0
  %v135 = vadd.f32 0.0, %v134
  %v136 = vpop.f32.mrb[0].mxu0
  %137 = vmatprep.mubr.f32.mxu0 0.0
  %138 = vmatmul.mubr.f32.gmra.mrb[0].mxu0 %v17
  %v139 = vpop.f32.mrb[0].mxu0
  %v140 = vadd.f32 0.0, %v139
  %v141 = vpop.f32.mrb[0].mxu0
  %142 = vmatprep.mubr.f32.mxu0 0.0
  %143 = vmatmul.mubr.f32.gmra.mrb[0].mxu0 %v18
  %v144 = vpop.f32.mrb[0].mxu0
  %v145 = vadd.f32 0.0, %v144
  %v146 = vpop.f32.mrb[0].mxu0
  %147 = vmatprep.mubr.f32.mxu0 0.0
  %148 = vmatmul.mubr.f32.gmra.mrb[0].mxu0 %v19
  %v149 = vpop.f32.mrb[0].mxu0
  %v150 = vadd.f32 0.0, %v149
  %v151 = vpop.f32.mrb[0].mxu0
  %152 = vmatprep.mubr.f32.mxu0 0.0
  %153 = vmatmul.mubr.f32.gmra.mrb[0].mxu0 %v20
  %v154 = vpop.f32.mrb[0].mxu0
  %v155 = vadd.f32 0.0, %v154
  %v156 = vpop.f32.mrb[0].mxu0
  %157 = vmatprep.mubr.f32.mxu0 0.0
  %158 = vmatmul.mubr.f32.gmra.mrb[0].mxu0 %v21
  %v159 = vpop.f32.mrb[0].mxu0
  %v160 = vadd.f32 0.0, %v159
  %v161 = vpop.f32.mrb[0].mxu0
  %162 = vmatprep.mubr.f32.mxu0 0.0
  %163 = vmatmul.mubr.f32.gmra.mrb[0].mxu0 %v22
  %v164 = vpop.f32.mrb[0].mxu0
  %v165 = vadd.f32 0.0, %v164
  %v166 = vpop.f32.mrb[0].mxu0
  %167 = vmatprep.mubr.f32.mxu0 0.0
  %168 = vmatmul.mubr.f32.gmra.mrb[0].mxu0 %v23
  %v169 = vpop.f32.mrb[0].mxu0
  %v170 = vadd.f32 0.0, %v169
  %v171 = vpop.f32.mrb[0].mxu0
  %172 = vmatprep.mubr.f32.mxu0 0.0
  %173 = vmatmul.mubr.f32.gmra.mrb[0].mxu0 %v24
  %v174 = vpop.f32.mrb[0].mxu0
  %v175 = vadd.f32 0.0, %v174
  %v176 = vpop.f32.mrb[0].mxu0
  %177 = vmatprep.mubr.f32.mxu0 0.0
  %178 = vmatmul.mubr.f32.gmra.mrb[0].mxu0 %v25
  %v179 = vpop.f32.mrb[0].mxu0
  %v180 = vadd.f32 0.0, %v179
  %v181 = vpop.f32.mrb[0].mxu0
  %182 = vmatprep.mubr.f32.mxu0 0.0
  %183 = vmatmul.mubr.f32.gmra.mrb[0].mxu0 %v26
  %v184 = vpop.f32.mrb[0].mxu0
  %v185 = vadd.f32 0.0, %v184
  %v186 = vpop.f32.mrb[0].mxu0
  %187 = vdwg.mxu0
  %188 = vst [vmem:[%s2] sm:$0xff] %v110
  %189 = vst [vmem:[%s2 + $0x8] sm:$0xff] %v115
  %190 = vst [vmem:[%s2 + $0x10] sm:$0xff] %v120
  %191 = vst [vmem:[%s2 + $0x18] sm:$0xff] %v125
  %192 = vst [vmem:[%s2 + $0x20] sm:$0xff] %v130
  %193 = vst [vmem:[%s2 + $0x28] sm:$0xff] %v135
  %194 = vst [vmem:[%s2 + $0x30] sm:$0xff] %v140
  %195 = vst [vmem:[%s2 + $0x38] sm:$0xff] %v145
  %196 = vst [vmem:[%s2 + $0x40] sm:$0xff] %v150
  %197 = vst [vmem:[%s2 + $0x48] sm:$0xff] %v155
  %198 = vst [vmem:[%s2 + $0x50] sm:$0xff] %v160
  %199 = vst [vmem:[%s2 + $0x58] sm:$0xff] %v165
  %200 = vst [vmem:[%s2 + $0x60] sm:$0xff] %v170
  %201 = vst [vmem:[%s2 + $0x68] sm:$0xff] %v175
  %202 = vst [vmem:[%s2 + $0x70] sm:$0xff] %v180
  %203 = vst [vmem:[%s2 + $0x78] sm:$0xff] %v185
  // Predicated region
  $region10: #{graph_convolution.3} parent=0 // pred_check
    _
  $region11: #{graph_convolution.3} parent=0 // pred_check_branch
    %205 = sbr.rel (0) target = $region13
  $region12: #{graph_convolution.3} parent=0 // pred_region
    _
  $region13: #{graph_convolution.3} parent=0 // pred_fallthru
    _
  // Predicated region
  $region14: #{graph_convolution.3} parent=0 // pred_check
    _
  $region15: #{graph_convolution.3} parent=0 // pred_check_branch
    %207 = sbr.rel (0) target = $region17
  $region16: #{graph_convolution.3} parent=0 // pred_region
    _
  $region17: #{graph_convolution.3} parent=0 // pred_fallthru
    _

</llo_original>
